<compile_context>
chip_gen: v5e
topology: v5e:2x2
jax: 0.10.0
libtpu: 0.0.40
codegen_flags: <defaults>
</compile_context>

<pallas_src>
import functools

import jax
import jax.numpy as jnp
from jax import lax
from jax.experimental import pallas as pl
from jax.experimental.pallas import tpu as pltpu

LANES = 128
MAX_TILE_R = 1024  # 1024 x 128 f32 = 512 KiB per input block (x2 inputs x2 bufs = 2 MiB)


def _focal_kernel(n_ref, x_ref, t_ref, o_ref, acc_ref, *, tile_r, alpha, gamma):
    i = pl.program_id(0)
    nsteps = pl.num_programs(0)

    @pl.when(i == 0)
    def _():
        acc_ref[...] = jnp.zeros_like(acc_ref)

    x = x_ref[...].astype(jnp.float32)
    t = t_ref[...].astype(jnp.float32)

    # Stable BCE-with-logits for binary targets:
    #   -(t*log(sigmoid(x)) + (1-t)*log(1-sigmoid(x))) == softplus(x) - t*x
    # Clamping the per-element loss at 100 matches PyTorch BCELoss' log clamp
    # at -100 (exact for binary targets).
    softplus_x = jnp.maximum(x, 0.0) + jnp.log1p(jnp.exp(-jnp.abs(x)))
    bce = jnp.minimum(softplus_x - t * x, 100.0)

    is_last = i == nsteps - 1

    # Hot path: no masking, just vreg-shaped partial-sum accumulation (VPU).
    @pl.when(jnp.logical_not(is_last))
    def _():
        acc_ref[...] += bce.reshape(tile_r // 8, 8, LANES).sum(axis=0)

    # Tail tile: mask out padding / out-of-bounds rows, then finalize.
    @pl.when(is_last)
    def _():
        n_total = n_ref[0]
        row_ids = lax.broadcasted_iota(jnp.int32, (tile_r, LANES), 0) + i * tile_r
        lane_ids = lax.broadcasted_iota(jnp.int32, (tile_r, LANES), 1)
        idx = row_ids * LANES + lane_ids
        bce_m = jnp.where(idx < n_total, bce, 0.0)
        acc_ref[...] += bce_m.reshape(tile_r // 8, 8, LANES).sum(axis=0)

        bce_mean = jnp.sum(acc_ref[...]) / n_total.astype(jnp.float32)
        bce_exp = jnp.exp(-bce_mean)
        focal = jnp.float32(alpha) * (1.0 - bce_exp) ** gamma * bce_mean
        o_ref[0, 0] = focal


def focal_loss(inputs, targets, alpha=0.8, gamma=2, smooth=1):
    # `smooth` is unused in the reference forward; kept for signature parity.
    x = inputs.reshape(-1)
    t = targets.reshape(-1)
    n = x.shape[0]

    # Pad only to a lane multiple when needed (<128 elements), never to a full
    # tile; the tail tile is handled by the in-kernel mask.
    n_lanes = ((n + LANES - 1) // LANES) * LANES
    if n_lanes != n:
        x = jnp.pad(x, (0, n_lanes - n))
        t = jnp.pad(t, (0, n_lanes - n))
    rows = n_lanes // LANES
    x2 = x.reshape(rows, LANES)
    t2 = t.reshape(rows, LANES)

    tile_r = min(MAX_TILE_R, ((rows + 7) // 8) * 8)
    num_tiles = pl.cdiv(rows, tile_r)

    n_arr = jnp.array([n], dtype=jnp.int32)

    kernel = functools.partial(
        _focal_kernel, tile_r=tile_r, alpha=float(alpha), gamma=int(gamma)
    )

    out = pl.pallas_call(
        kernel,
        out_shape=jax.ShapeDtypeStruct((1, 1), jnp.float32),
        grid_spec=pltpu.PrefetchScalarGridSpec(
            num_scalar_prefetch=1,
            grid=(num_tiles,),
            in_specs=[
                pl.BlockSpec((tile_r, LANES), lambda i, n_ref: (i, 0)),
                pl.BlockSpec((tile_r, LANES), lambda i, n_ref: (i, 0)),
            ],
            out_specs=pl.BlockSpec(memory_space=pltpu.SMEM),
            scratch_shapes=[pltpu.VMEM((8, LANES), jnp.float32)],
        ),
        compiler_params=pltpu.CompilerParams(
            dimension_semantics=("arbitrary",)
        ),
    )(n_arr, x2, t2)
    return out[0, 0]


def _focal_loss_ref(inputs, targets, alpha=0.8, gamma=2):
    # Literal PyTorch semantics: sigmoid -> BCELoss (mean, log clamp at -100).
    p = jax.nn.sigmoid(inputs.reshape(-1).astype(jnp.float32))
    t = targets.reshape(-1).astype(jnp.float32)
    bce = jnp.mean(
        -(t * jnp.maximum(jnp.log(p), -100.0)
          + (1.0 - t) * jnp.maximum(jnp.log(1.0 - p), -100.0))
    )
    return alpha * (1.0 - jnp.exp(-bce)) ** gamma * bce


if __name__ == "__main__":
    key = jax.random.PRNGKey(0)
    k1, k2 = jax.random.split(key)
    # NCHW-shaped logits and binary targets, as the module's forward implies.
    x = jax.random.normal(k1, (2, 4, 16, 16), dtype=jnp.float32)
    tgt = jax.random.bernoulli(k2, 0.5, (2, 4, 16, 16)).astype(jnp.float32)

    loss = jax.block_until_ready(focal_loss(x, tgt))
    ref = jax.block_until_ready(_focal_loss_ref(x, tgt))
    assert jnp.allclose(loss, ref, rtol=1e-5, atol=1e-5), (loss, ref)
    print("KERNEL_OK")
</pallas_src>

<mosaic_0001>
module attributes {stable_mosaic.version = 11 : i64} {
  func.func @_focal_kernel(%arg0: i32, %arg1: memref<1xi32, #tpu.memory_space<smem>>, %arg2: memref<16x128xf32, #tpu.memory_space<vmem>>, %arg3: memref<16x128xf32, #tpu.memory_space<vmem>>, %arg4: memref<1x1xf32, #tpu.memory_space<smem>>, %arg5: memref<8x128xf32, #tpu.memory_space<vmem>>) attributes {dimension_semantics = [#tpu.dimension_semantics<arbitrary>], iteration_bounds = array<i64: 1>, scalar_prefetch = 1 : i64, scratch_operands = 1 : i64, tpu.core_type = #tpu.core_type<tc>, window_params = [{transform_indices = @transform_0, window_bounds = array<i64: 16, 128>}, {transform_indices = @transform_1, window_bounds = array<i64: 16, 128>}, {transform_indices = @transform_2, window_bounds = array<i64: 1, 1>}]} {
    %c0_i32 = arith.constant 0 : i32
    %0 = arith.cmpi eq, %arg0, %c0_i32 : i32
    %1 = arith.extui %0 : i1 to i32
    %c0_i32_0 = arith.constant 0 : i32
    %2 = arith.cmpi ne, %1, %c0_i32_0 : i32
    scf.if %2 {
      %cst_9 = arith.constant 0.000000e+00 : f32
      %23 = vector.broadcast %cst_9 : f32 to vector<8x128xf32>
      %c0_10 = arith.constant 0 : index
      %c0_11 = arith.constant 0 : index
      %24 = vector.load %arg5[%c0_10, %c0_11] : memref<8x128xf32, #tpu.memory_space<vmem>>, vector<8x128xf32>
      tpu.vector_store %arg5[%c0_10, %c0_11], %23 {strides = array<i32>} : memref<8x128xf32, #tpu.memory_space<vmem>>, vector<8x128xf32>,
    } else {
    }
    %c0 = arith.constant 0 : index
    %c0_1 = arith.constant 0 : index
    %3 = vector.load %arg2[%c0, %c0_1] : memref<16x128xf32, #tpu.memory_space<vmem>>, vector<16x128xf32>
    %c0_2 = arith.constant 0 : index
    %c0_3 = arith.constant 0 : index
    %4 = vector.load %arg3[%c0_2, %c0_3] : memref<16x128xf32, #tpu.memory_space<vmem>>, vector<16x128xf32>
    %cst = arith.constant 0.000000e+00 : f32
    %5 = vector.broadcast %cst : f32 to vector<16x128xf32>
    %6 = arith.maximumf %3, %5 : vector<16x128xf32>
    %7 = math.absf %3 : vector<16x128xf32>
    %cst_4 = arith.constant 0.000000e+00 : f32
    %8 = vector.broadcast %cst_4 : f32 to vector<16x128xf32>
    %9 = arith.subf %8, %7 : vector<16x128xf32>
    %10 = math.exp %9 : vector<16x128xf32>
    %11 = math.log1p %10 : vector<16x128xf32>
    %12 = arith.addf %6, %11 : vector<16x128xf32>
    %13 = arith.mulf %4, %3 : vector<16x128xf32>
    %14 = arith.subf %12, %13 : vector<16x128xf32>
    %cst_5 = arith.constant 1.000000e+02 : f32
    %15 = vector.broadcast %cst_5 : f32 to vector<16x128xf32>
    %16 = arith.minimumf %14, %15 : vector<16x128xf32>
    %c0_i32_6 = arith.constant 0 : i32
    %17 = arith.cmpi eq, %arg0, %c0_i32_6 : i32
    %true = arith.constant true
    %18 = arith.xori %17, %true : i1
    %19 = arith.extui %18 : i1 to i32
    %c0_i32_7 = arith.constant 0 : i32
    %20 = arith.cmpi ne, %19, %c0_i32_7 : i32
    scf.if %20 {
      %c0_9 = arith.constant 0 : index
      %c0_10 = arith.constant 0 : index
      %23 = vector.load %arg5[%c0_9, %c0_10] : memref<8x128xf32, #tpu.memory_space<vmem>>, vector<8x128xf32>
      %24 = vector.shape_cast %16 : vector<16x128xf32> to vector<2x8x128xf32>
      %cst_11 = arith.constant dense<0.000000e+00> : vector<8x128xf32>
      %25 = vector.multi_reduction <add>, %24, %cst_11 [0] : vector<2x8x128xf32> to vector<8x128xf32>
      %26 = arith.addf %23, %25 : vector<8x128xf32>
      %c0_12 = arith.constant 0 : index
      %c0_13 = arith.constant 0 : index
      %27 = vector.load %arg5[%c0_12, %c0_13] : memref<8x128xf32, #tpu.memory_space<vmem>>, vector<8x128xf32>
      tpu.vector_store %arg5[%c0_12, %c0_13], %26 {strides = array<i32>} : memref<8x128xf32, #tpu.memory_space<vmem>>, vector<8x128xf32>,
    } else {
    }
    %21 = arith.extui %17 : i1 to i32
    %c0_i32_8 = arith.constant 0 : i32
    %22 = arith.cmpi ne, %21, %c0_i32_8 : i32
    scf.if %22 {
      %c0_9 = arith.constant 0 : index
      %23 = memref.load %arg1[%c0_9] : memref<1xi32, #tpu.memory_space<smem>>
      %24 = tpu.iota {dimensions = array<i32: 0>} : vector<16x128xi32>
      %c16_i32 = arith.constant 16 : i32
      %25 = arith.muli %arg0, %c16_i32 : i32
      %26 = vector.broadcast %25 : i32 to vector<16x128xi32>
      %27 = arith.addi %24, %26 : vector<16x128xi32>
      %28 = tpu.iota {dimensions = array<i32: 1>} : vector<16x128xi32>
      %c128_i32 = arith.constant 128 : i32
      %29 = vector.broadcast %c128_i32 : i32 to vector<16x128xi32>
      %30 = arith.muli %27, %29 : vector<16x128xi32>
      %31 = arith.addi %30, %28 : vector<16x128xi32>
      %32 = vector.broadcast %23 : i32 to vector<16x128xi32>
      %33 = arith.cmpi slt, %31, %32 : vector<16x128xi32>
      %cst_10 = arith.constant 0.000000e+00 : f32
      %34 = vector.broadcast %cst_10 : f32 to vector<16x128xf32>
      %35 = arith.select %33, %16, %34 : vector<16x128xi1>, vector<16x128xf32>
      %c0_11 = arith.constant 0 : index
      %c0_12 = arith.constant 0 : index
      %36 = vector.load %arg5[%c0_11, %c0_12] : memref<8x128xf32, #tpu.memory_space<vmem>>, vector<8x128xf32>
      %37 = vector.shape_cast %35 : vector<16x128xf32> to vector<2x8x128xf32>
      %cst_13 = arith.constant dense<0.000000e+00> : vector<8x128xf32>
      %38 = vector.multi_reduction <add>, %37, %cst_13 [0] : vector<2x8x128xf32> to vector<8x128xf32>
      %39 = arith.addf %36, %38 : vector<8x128xf32>
      %c0_14 = arith.constant 0 : index
      %c0_15 = arith.constant 0 : index
      %40 = vector.load %arg5[%c0_14, %c0_15] : memref<8x128xf32, #tpu.memory_space<vmem>>, vector<8x128xf32>
      tpu.vector_store %arg5[%c0_14, %c0_15], %39 {strides = array<i32>} : memref<8x128xf32, #tpu.memory_space<vmem>>, vector<8x128xf32>,
      %c0_16 = arith.constant 0 : index
      %c0_17 = arith.constant 0 : index
      %41 = vector.load %arg5[%c0_16, %c0_17] : memref<8x128xf32, #tpu.memory_space<vmem>>, vector<8x128xf32>
      %42 = vector.shape_cast %41 : vector<8x128xf32> to vector<1x8x128xf32>
      %cst_18 = arith.constant dense<0.000000e+00> : vector<1xf32>
      %43 = vector.multi_reduction <add>, %42, %cst_18 [1, 2] : vector<1x8x128xf32> to vector<1xf32>
      %44 = vector.shape_cast %43 : vector<1xf32> to vector<1x1x1xf32>
      %45 = vector.extract %44[0, 0, 0] : f32 from vector<1x1x1xf32>
      %46 = arith.sitofp %23 : i32 to f32
      %47 = arith.divf %45, %46 : f32
      %cst_19 = arith.constant 0.000000e+00 : f32
      %48 = arith.subf %cst_19, %47 : f32
      %49 = math.exp %48 : f32
      %cst_20 = arith.constant 1.000000e+00 : f32
      %50 = arith.subf %cst_20, %49 : f32
      %51 = arith.mulf %50, %50 : f32
      %cst_21 = arith.constant 8.000000e-01 : f32
      %52 = arith.mulf %cst_21, %51 : f32
      %53 = arith.mulf %52, %47 : f32
      %c0_22 = arith.constant 0 : index
      %c0_23 = arith.constant 0 : index
      %54 = memref.load %arg4[%c0_22, %c0_23] : memref<1x1xf32, #tpu.memory_space<smem>>
      memref.store %53, %arg4[%c0_22, %c0_23] : memref<1x1xf32, #tpu.memory_space<smem>>
    } else {
    }
    return
  }
  func.func @transform_0(%arg0: i32, %arg1: memref<1xi32, #tpu.memory_space<smem>>) -> (i32, i32) {
    %c0_i32 = arith.constant 0 : i32
    %c0_i32_0 = arith.constant 0 : i32
    return %arg0, %c0_i32 : i32, i32
  }
  func.func @transform_1(%arg0: i32, %arg1: memref<1xi32, #tpu.memory_space<smem>>) -> (i32, i32) {
    %c0_i32 = arith.constant 0 : i32
    %c0_i32_0 = arith.constant 0 : i32
    return %arg0, %c0_i32 : i32, i32
  }
  func.func @transform_2(%arg0: i32, %arg1: memref<1xi32, #tpu.memory_space<smem>>) -> (i32, i32) {
    %c0_i32 = arith.constant 0 : i32
    %c0_i32_0 = arith.constant 0 : i32
    %c0_i32_1 = arith.constant 0 : i32
    return %c0_i32, %c0_i32_0 : i32, i32
  }
}

</mosaic_0001>

<llo_original>
// kernel: tpu_custom_call.1
$region0: #{tpu_custom_call.1}
  #allocation0 [shape = 'u32[]', space=smem, size = 0x4, offset = 0x4, fixed_abs, tag = 'smem constant byte address 0x4 - core index']
  #allocation1 [shape = 'u32[72,128]{1,0:T(1,128)}', space=vmem, size = 0x9000, scoped, tag = 'internal scratch']
  #allocation2 [shape = 'f32[8,128]{1,0:T(8,128)}', space=vmem, size = 0x1000, scoped, tag = 'scratch operand']
  #allocation3 [shape = 's32[1]{0}', space=sflag, size = 0x4, scoped, tag = 'scoped memory for tpu_custom_call.1']
  #allocation4 [shape = 's32[1]{0:T(128)S(6)}', space=smem, size = 0x200, scoped, tag = 'prefetched SMEM operand 0']
  %s0 = inlined_call_operand.<no memory space> [shape: s32[1], index: 0, kind: input, shape index: {}]
  %s1 = inlined_call_operand.hbm [shape: f32[16,128], index: 1, kind: input, shape index: {}]
  %s2 = inlined_call_operand.hbm [shape: f32[16,128], index: 2, kind: input, shape index: {}]
  %s3 = inlined_call_operand.hbm [shape: f32[1,1], index: 3, kind: output, shape index: {}]
  %s4 = sld [smem:[#allocation0]]
  $region38: #{tpu_custom_call.1} parent=0
    _
  %s6 = ssub.s32 1, %s4
  %s7 = scalar_select 0, %s6, %s4
  %8 = sst [smem:[#allocation4]] %s0
  $region1: #{tpu_custom_call.1} parent=0
    #allocation5 [shape = 'u8[8192]{0}', space=vmem, size = 0x2000, scoped, tag = 'input window, operand 1, single buffered']
    #allocation6 [shape = 's32[1]{0}', space=sflag, size = 0x4, scoped, tag = 'scoped memory for tpu_custom_call.1']
    #allocation7 [shape = 's32[1]{0}', space=sflag, size = 0x4, scoped, tag = 'scoped memory for tpu_custom_call.1']
    #allocation8 [shape = 'u8[8192]{0}', space=vmem, size = 0x2000, scoped, tag = 'input window, operand 2, single buffered']
    #allocation9 [shape = 's32[1]{0}', space=sflag, size = 0x4, scoped, tag = 'scoped memory for tpu_custom_call.1']
    #allocation10 [shape = 'u8[512]{0}', space=smem, size = 0x200, scoped, tag = 'output window, operand 0, single buffered']
    %9 = vsyncpa [#allocation6], 0
    %10 = vsyncpa [#allocation9], 0
    %11 = vsyncpa [#allocation7], 0
    // Predicated region
    $region2: #{tpu_custom_call.1} parent=1 // pred_check
      _
    $region3: #{tpu_custom_call.1} parent=1 // pred_check_branch
      %13 = sbr.rel (0) target = $region5
    $region4: #{tpu_custom_call.1} parent=1 // pred_region
      %15 = vsyncadd [#allocation6], 0
      %s16 = sshll.u32 %s1, 4
      %s17 = int_to_ptr.hbm [resolvable:$true] %s16
      %s18 = sshll.u32 [#allocation5], 4
      %s19 = int_to_ptr.vmem [resolvable:$true] %s18
      %24 = dma.hbm_to_vmem [thread:$0]  %s17, 256, %s19, [#allocation6], 128, 128, 8
    $region5: #{tpu_custom_call.1} parent=1 // pred_fallthru
      _
    // Predicated region
    $region6: #{tpu_custom_call.1} parent=1 // pred_check
      _
    $region7: #{tpu_custom_call.1} parent=1 // pred_check_branch
      %26 = sbr.rel (0) target = $region9
    $region8: #{tpu_custom_call.1} parent=1 // pred_region
      %28 = vsyncadd [#allocation9], 0
      %s29 = sshll.u32 %s2, 4
      %s30 = int_to_ptr.hbm [resolvable:$true] %s29
      %s31 = sshll.u32 [#allocation8], 4
      %s32 = int_to_ptr.vmem [resolvable:$true] %s31
      %37 = dma.hbm_to_vmem [thread:$0]  %s30, 256, %s32, [#allocation9], 128, 128, 8
    $region9: #{tpu_custom_call.1} parent=1 // pred_fallthru
      _
    // Predicated region
    $region10: #{tpu_custom_call.1} parent=1 // pred_check
      _
    $region11: #{tpu_custom_call.1} parent=1 // pred_check_branch
      %39 = sbr.rel (0) target = $region13
    $region12: #{tpu_custom_call.1} parent=1 // pred_region
      %41 = dma.done [#allocation6], 256
    $region13: #{tpu_custom_call.1} parent=1 // pred_fallthru
      _
    // Predicated region
    $region14: #{tpu_custom_call.1} parent=1 // pred_check
      _
    $region15: #{tpu_custom_call.1} parent=1 // pred_check_branch
      %43 = sbr.rel (0) target = $region17
    $region16: #{tpu_custom_call.1} parent=1 // pred_region
      %45 = dma.done [#allocation9], 256
    $region17: #{tpu_custom_call.1} parent=1 // pred_fallthru
      _
    %p46 = scmp.eq.s32.totalorder 0, 0
    // Predicated region
    $region18: #{tpu_custom_call.1} parent=1 // pred_check
      %p47 = pneg %p46
    $region19: #{tpu_custom_call.1} parent=1 // pred_check_branch
      %49 = sbr.rel (%p47) target = $region21
    $region20: #{tpu_custom_call.1} parent=1 // pred_region
      %50 = vst [vmem:[#allocation2] sm:$0xff] 0.0
    $region21: #{tpu_custom_call.1} parent=1 // pred_fallthru
      _
    %v51 = vld [vmem:[#allocation5] sm:$0xff]
    %v52 = vld [vmem:[#allocation5 + $0x8] sm:$0xff]
    %v53 = vld [vmem:[#allocation8] sm:$0xff]
    %v54 = vld [vmem:[#allocation8 + $0x8] sm:$0xff]
    %v55 = vmax.f32 %v51, 0.0
    %v56 = vmax.f32 %v52, 0.0
    %v57 = vand.u32 2147483647, %v51
    %v58 = vand.u32 2147483647, %v52
    %v59 = vsub.f32 0.0, %v57
    %v60 = vsub.f32 0.0, %v58
    %v61 = vmul.f32 %v59, 1.442695
    %v62 = vpow.pop %v61
    %v63 = vmul.f32 %v60, 1.442695
    %v64 = vpow.pop %v63
    %v65 = vadd.f32 %v62, 1.0
    %v66 = vlog2.pop %v65
    %v67 = vmul.f32 %v66, 0.6931472
    %v68 = vmul.f32 -0.5, %v62
    %v69 = vadd.f32 %v68, 1.0
    %v70 = vmul.f32 %v69, %v62
    %v71 = vand.u32 2147483647, %v62
    %vm72 = vcmp.lt.f32.partialorder %v71, 0.0004427343
    %v73 = vsel %vm72, %v70, %v67
    %v74 = vadd.f32 %v64, 1.0
    %v75 = vlog2.pop %v74
    %v76 = vmul.f32 %v75, 0.6931472
    %v77 = vmul.f32 -0.5, %v64
    %v78 = vadd.f32 %v77, 1.0
    %v79 = vmul.f32 %v78, %v64
    %v80 = vand.u32 2147483647, %v64
    %vm81 = vcmp.lt.f32.partialorder %v80, 0.0004427343
    %v82 = vsel %vm81, %v79, %v76
    %v83 = vadd.f32 %v55, %v73
    %v84 = vadd.f32 %v56, %v82
    %v85 = vmul.f32 %v53, %v51
    %v86 = vmul.f32 %v54, %v52
    %v87 = vsub.f32 %v83, %v85
    %v88 = vsub.f32 %v84, %v86
    %v89 = vmin.f32 %v87, 100.0
    %v90 = vmin.f32 %v88, 100.0
    %p91 = scmp.ne.s32.totalorder 0, 0
    // Predicated region
    $region22: #{tpu_custom_call.1} parent=1 // pred_check
      %p92 = pneg %p91
    $region23: #{tpu_custom_call.1} parent=1 // pred_check_branch
      %94 = sbr.rel (%p92) target = $region25
    $region24: #{tpu_custom_call.1} parent=1 // pred_region
      %v95 = vld [vmem:[#allocation2] sm:$0xff]
      %v96 = vadd.f32 %v89, %v90
      %v97 = vadd.f32 %v95, %v96
      %98 = vst [vmem:[#allocation2] sm:$0xff] %v97
    $region25: #{tpu_custom_call.1} parent=1 // pred_fallthru
      _
    // Predicated region
    $region26: #{tpu_custom_call.1} parent=1 // pred_check
      %p99 = pneg %p46
    $region27: #{tpu_custom_call.1} parent=1 // pred_check_branch
      %101 = sbr.rel (%p99) target = $region29
    $region28: #{tpu_custom_call.1} parent=1 // pred_region
      %s102 = sld [smem:[#allocation4]]
      %v103 = vlaneseq
      %v104 = vshrl.u32 %v103, 7
      %v105 = vadd.s32 %v104, 8
      %s106 = smul.u32 0, 16
      %v107 = vstv %s106
      %v108 = vadd.s32 %v104, %v107
      %v109 = vadd.s32 %v105, %v107
      %v110 = vlaneseq
      %v111 = vand.u32 %v110, 127
      %v112 = vmul.u32 %v108, 128
      %v113 = vmul.u32 %v109, 128
      %v114 = vadd.s32 %v112, %v111
      %v115 = vadd.s32 %v113, %v111
      %v116 = vstv %s102
      %vm117 = vcmp.lt.s32.totalorder %v114, %v116
      %vm118 = vcmp.lt.s32.totalorder %v115, %v116
      %v119 = vsel %vm117, %v89, 0.0
      %v120 = vsel %vm118, %v90, 0.0
      %v121 = vld [vmem:[#allocation2] sm:$0xff]
      %v122 = vadd.f32 %v119, %v120
      %v123 = vadd.f32 %v121, %v122
      %124 = vst [vmem:[#allocation2] sm:$0xff] %v123
      %v125 = vld [vmem:[#allocation2] sm:$0xff]
      %126 = vadd.xlane.f32.xlu0 %v125
      %v127 = vpop.xlane.xlu0 %126
      %v128 = vrot.slane %v127, 4
      %v129 = vadd.f32 %v127, %v128
      %v130 = vrot.slane %v129, 2
      %v131 = vadd.f32 %v129, %v130
      %v132 = vrot.slane %v131, 1
      %v133 = vadd.f32 %v131, %v132
      %s134 = vtos %v133
      %s135 = scvt.s32.f32 %s102
      %v136 = vstv %s135
      %v137 = vrcp.pop %v136
      %v138 = vmul.f32 %v136, %v137
      %v139 = vsub.f32 1.0, %v138
      %v140 = vmul.f32 %v137, %v139
      %v141 = vadd.f32 %v137, %v140
      %vm142 = vweird.f32 %v136
      %vm143 = vweird.f32 %v137
      %vm144 = vmor %vm142, %vm143
      %v145 = vsel %vm144, %v137, %v141
      %v146 = vand.u32 2147483647, %v136
      %vm147 = vcmp.eq.f32.partialorder %v146, 8.507059e+37
      %v148 = vand.u32 %v136, 2147483648
      %v149 = vor.u32 1.1754944e-38, %v148
      %v150 = vsel %vm147, %v149, %v145
      %s151 = vtos %v150
      %s152 = smul.f32 %s134, %s151
      %s153 = ssub.f32 0.0, %s152
      %v154 = vstv %s153
      %v155 = vmul.f32 %v154, 1.442695
      %v156 = vpow.pop %v155
      %s157 = vtos %v156
      %s158 = ssub.f32 1.0, %s157
      %s159 = smul.f32 %s158, %s158
      %s160 = smul.f32 %s159, 0.8
      %s161 = smul.f32 %s160, %s152
      %s162 = scalar_lea.smem [#allocation10], 0
      %163 = sst [smem:[%s162]] %s161
    $region29: #{tpu_custom_call.1} parent=1 // pred_fallthru
      _
    // Predicated region
    $region30: #{tpu_custom_call.1} parent=1 // pred_check
      _
    $region31: #{tpu_custom_call.1} parent=1 // pred_check_branch
      %165 = sbr.rel (0) target = $region33
    $region32: #{tpu_custom_call.1} parent=1 // pred_region
      %167 = vsyncadd [#allocation7], 0
      %s169 = sshll.u32 %s3, 4
      %s170 = int_to_ptr.hbm [resolvable:$true] %s169
      %172 = dma.smem_to_hbm [#allocation10], 16, %s170, [#allocation7]
    $region33: #{tpu_custom_call.1} parent=1 // pred_fallthru
      _
    // Predicated region
    $region34: #{tpu_custom_call.1} parent=1 // pred_check
      _
    $region35: #{tpu_custom_call.1} parent=1 // pred_check_branch
      %174 = sbr.rel (0) target = $region37
    $region36: #{tpu_custom_call.1} parent=1 // pred_region
      %176 = dma.done [#allocation7], 16
    $region37: #{tpu_custom_call.1} parent=1 // pred_fallthru
      _
    %177 = sfence
    %178 = vsyncpa [#allocation6], 1
    %179 = vsyncpa [#allocation9], 1
    %180 = vsyncpa [#allocation7], 1

</llo_original>
